<compile_context>
chip_gen: v7x
topology: tpu7x:2x2x1
jax: 0.10.0
libtpu: 0.0.40
codegen_flags: <defaults>
</compile_context>

<pallas_src>
import jax
import jax.numpy as jnp
from jax.experimental import pallas as pl
from jax.experimental.pallas import tpu as pltpu


def _round_up(v, m):
    return ((v + m - 1) // m) * m


def _pick_batch_tile(B):
    # Output block is (bB, C): its second-to-last dim must be a multiple of 8
    # or equal to B, and bB must divide B so no ragged batch tile reaches the
    # channel MLP.
    if B <= 8:
        return B
    for bB in (32, 24, 16, 8):
        if B % bB == 0:
            return bB
    return B


def _pick_spatial_tile(HW, x_row_bytes, max_tile):
    # ~8 MiB budget for the double-buffered x block: comfortably under every
    # generation's scoped-VMEM default while keeping lane tiles large
    # (>=512 where HW allows — the measured HBM-roofline sweet spot).
    budget = 8 * 1024 * 1024
    t = budget // (2 * x_row_bytes)
    t = (t // 128) * 128
    cap = max(128, (max_tile // 128) * 128)
    t = max(128, min(t, cap))
    if HW <= t:
        return HW          # single spatial step; full-extent block is legal
    return t               # multiple of 128; ragged last tile masked in-kernel


def _make_kernel(HW, tHW, ragged):
    def kernel(x_ref, w1_ref, w2_ref, o_ref, sum_acc, max_acc):
        k = pl.program_id(1)

        @pl.when(k == 0)
        def _init():
            sum_acc[...] = jnp.zeros(sum_acc.shape, sum_acc.dtype)
            max_acc[...] = jnp.full(max_acc.shape, -jnp.inf, max_acc.dtype)

        # f32 accumulation regardless of input dtype.
        xf = x_ref[...].astype(jnp.float32)              # (bB, C, tHW)
        if ragged:
            col = jax.lax.broadcasted_iota(jnp.int32, xf.shape, 2)
            valid = (k * tHW + col) < HW
            xs = jnp.where(valid, xf, 0.0)
            xm = jnp.where(valid, xf, -jnp.inf)
        else:
            xs = xf
            xm = xf

        sum_acc[...] += jnp.sum(xs, axis=-1)
        max_acc[...] = jnp.maximum(max_acc[...], jnp.max(xm, axis=-1))

        @pl.when(k == pl.num_programs(1) - 1)
        def _finalize():
            avg = sum_acc[...] * (1.0 / HW)              # true H*W divisor
            mx = max_acc[...]
            nb = avg.shape[0]
            # Shared MLP fused over stacked [avg; max]: one fc1/fc2 pass.
            # (For tiny C this under-uses the MXU, but it runs once per batch
            #  tile in the epilogue, off the bandwidth-bound path.)
            pooled = jnp.concatenate([avg, mx], axis=0)  # (2*bB, C)
            w1 = w1_ref[...].astype(jnp.float32)
            w2 = w2_ref[...].astype(jnp.float32)
            h = jnp.maximum(
                jnp.dot(pooled, w1.T, preferred_element_type=jnp.float32), 0.0)
            o = jnp.dot(h, w2.T, preferred_element_type=jnp.float32)
            o_ref[...] = jax.nn.sigmoid(o[:nb] + o[nb:]).astype(o_ref.dtype)

    return kernel


def channel_attention(x, w1, w2, *, max_spatial_tile=2048):
    """ChannelAttention forward.

    x: (B, C, H, W); w1: (C//2, C) fc1 1x1-conv weight; w2: (C, C//2) fc2.
    Returns sigmoid(fc2(relu(fc1(avgpool(x)))) + fc2(relu(fc1(maxpool(x)))))
    with shape (B, C, 1, 1), matching the PyTorch module.
    """
    B, C, H, W = x.shape
    Cr = w1.shape[0]
    assert w1.shape == (Cr, C) and w2.shape == (C, Cr)
    HW = H * W
    x3 = x.reshape(B, C, HW)

    bB = _pick_batch_tile(B)
    # Bytes of one (bB, C) row-group of the x block in VMEM (C pads to 8 sublanes).
    x_row_bytes = bB * _round_up(C, 8) * x.dtype.itemsize
    tHW = _pick_spatial_tile(HW, x_row_bytes, max_spatial_tile)
    n_hw = pl.cdiv(HW, tHW)
    ragged = (HW % tHW) != 0

    # Raise the scoped-VMEM limit only if a huge channel count pushes the
    # double-buffered block past the smallest default (16 MiB on v5e).
    cp = dict(dimension_semantics=("parallel", "arbitrary"))
    need = (2 * x_row_bytes * tHW
            + w1.size * w1.dtype.itemsize + w2.size * w2.dtype.itemsize
            + (1 << 20))
    if need > (16 << 20):
        cp["vmem_limit_bytes"] = min(int(need * 1.25), 100 << 20)

    itemsize = x.dtype.itemsize
    cost = pl.CostEstimate(
        flops=2 * B * C * HW + 8 * B * C * Cr,
        transcendentals=B * C,
        bytes_accessed=(x3.size * itemsize
                        + w1.size * w1.dtype.itemsize
                        + w2.size * w2.dtype.itemsize
                        + B * C * itemsize),
    )

    out = pl.pallas_call(
        _make_kernel(HW, tHW, ragged),
        out_shape=jax.ShapeDtypeStruct((B, C), x.dtype),
        grid_spec=pltpu.PrefetchScalarGridSpec(
            num_scalar_prefetch=0,
            grid=(B // bB, n_hw),
            in_specs=[
                pl.BlockSpec((bB, C, tHW), lambda b, k: (b, 0, k)),
                pl.BlockSpec((Cr, C), lambda b, k: (0, 0)),
                pl.BlockSpec((C, Cr), lambda b, k: (0, 0)),
            ],
            out_specs=pl.BlockSpec((bB, C), lambda b, k: (b, 0)),
            scratch_shapes=[
                pltpu.VMEM((bB, C), jnp.float32),   # running sum
                pltpu.VMEM((bB, C), jnp.float32),   # running max
            ],
        ),
        compiler_params=pltpu.CompilerParams(**cp),
        cost_estimate=cost,
    )(x3, w1, w2)

    return out.reshape(B, C, 1, 1)


if __name__ == "__main__":
    key = jax.random.PRNGKey(0)
    kx, k1, k2 = jax.random.split(key, 3)

    B, C, H, W = 2, 4, 16, 16         # in_planes = 4
    Cr = C // 2

    x = jax.random.normal(kx, (B, C, H, W), dtype=jnp.float32)
    # Deterministic synthetic weights for the 1x1 convs (bias=False).
    w1 = jax.random.normal(k1, (Cr, C), dtype=jnp.float32) * 0.1   # fc1
    w2 = jax.random.normal(k2, (C, Cr), dtype=jnp.float32) * 0.1   # fc2

    # max_spatial_tile=128 -> 2 spatial grid steps at this small demo shape,
    # exercising the tiled running-sum / running-max accumulation path.
    y = channel_attention(x, w1, w2, max_spatial_tile=128)
    jax.block_until_ready(y)

    # Pure-JAX reference (same math, outside Pallas).
    xf = x.reshape(B, C, H * W)
    avg = jnp.mean(xf, axis=-1)
    mx = jnp.max(xf, axis=-1)
    mlp = lambda v: jnp.maximum(v @ w1.T, 0.0) @ w2.T
    ref = jax.nn.sigmoid(mlp(avg) + mlp(mx)).reshape(B, C, 1, 1)

    assert y.shape == (B, C, 1, 1)
    assert jnp.allclose(y, ref, atol=1e-5, rtol=1e-5), "mismatch vs reference"

    print("KERNEL_OK")
</pallas_src>

<mosaic_0001>
module attributes {stable_mosaic.version = 11 : i64} {
  func.func @kernel(%arg0: i32, %arg1: i32, %arg2: memref<2x4x128xf32, #tpu.memory_space<vmem>>, %arg3: memref<2x4xf32, #tpu.memory_space<vmem>>, %arg4: memref<4x2xf32, #tpu.memory_space<vmem>>, %arg5: memref<2x4xf32, #tpu.memory_space<vmem>>, %arg6: memref<2x4xf32, #tpu.memory_space<vmem>>, %arg7: memref<2x4xf32, #tpu.memory_space<vmem>>) attributes {dimension_semantics = [#tpu.dimension_semantics<parallel>, #tpu.dimension_semantics<arbitrary>], iteration_bounds = array<i64: 1, 2>, scalar_prefetch = 0 : i64, scratch_operands = 2 : i64, tpu.core_type = #tpu.core_type<tc>, window_params = [{transform_indices = @transform_0, window_bounds = array<i64: 2, 4, 128>}, {pipeline_mode = #tpu.pipeline_mode<synchronous>, transform_indices = @transform_1, window_bounds = array<i64: 2, 4>}, {pipeline_mode = #tpu.pipeline_mode<synchronous>, transform_indices = @transform_2, window_bounds = array<i64: 4, 2>}, {transform_indices = @transform_3, window_bounds = array<i64: 2, 4>}]} {
    %c0_i32 = arith.constant 0 : i32
    %0 = arith.cmpi eq, %arg1, %c0_i32 : i32
    %1 = arith.extui %0 : i1 to i32
    %c0_i32_0 = arith.constant 0 : i32
    %2 = arith.cmpi ne, %1, %c0_i32_0 : i32
    scf.if %2 {
      %cst_13 = arith.constant 0.000000e+00 : f32
      %15 = vector.broadcast %cst_13 : f32 to vector<2x4xf32>
      %c0_14 = arith.constant 0 : index
      %c0_15 = arith.constant 0 : index
      %16 = vector.load %arg6[%c0_14, %c0_15] : memref<2x4xf32, #tpu.memory_space<vmem>>, vector<2x4xf32>
      tpu.vector_store %arg6[%c0_14, %c0_15], %15 {strides = array<i32>} : memref<2x4xf32, #tpu.memory_space<vmem>>, vector<2x4xf32>,
      %cst_16 = arith.constant 0xFF800000 : f32
      %17 = vector.broadcast %cst_16 : f32 to vector<2x4xf32>
      %c0_17 = arith.constant 0 : index
      %c0_18 = arith.constant 0 : index
      %18 = vector.load %arg7[%c0_17, %c0_18] : memref<2x4xf32, #tpu.memory_space<vmem>>, vector<2x4xf32>
      tpu.vector_store %arg7[%c0_17, %c0_18], %17 {strides = array<i32>} : memref<2x4xf32, #tpu.memory_space<vmem>>, vector<2x4xf32>,
    } else {
    }
    %c0 = arith.constant 0 : index
    %c0_1 = arith.constant 0 : index
    %c0_2 = arith.constant 0 : index
    %3 = vector.load %arg2[%c0, %c0_1, %c0_2] : memref<2x4x128xf32, #tpu.memory_space<vmem>>, vector<2x4x128xf32>
    %c0_3 = arith.constant 0 : index
    %c0_4 = arith.constant 0 : index
    %4 = vector.load %arg6[%c0_3, %c0_4] : memref<2x4xf32, #tpu.memory_space<vmem>>, vector<2x4xf32>
    %cst = arith.constant dense<0.000000e+00> : vector<2x4xf32>
    %5 = vector.multi_reduction <add>, %3, %cst [2] : vector<2x4x128xf32> to vector<2x4xf32>
    %6 = arith.addf %4, %5 : vector<2x4xf32>
    %c0_5 = arith.constant 0 : index
    %c0_6 = arith.constant 0 : index
    %7 = vector.load %arg6[%c0_5, %c0_6] : memref<2x4xf32, #tpu.memory_space<vmem>>, vector<2x4xf32>
    tpu.vector_store %arg6[%c0_5, %c0_6], %6 {strides = array<i32>} : memref<2x4xf32, #tpu.memory_space<vmem>>, vector<2x4xf32>,
    %c0_7 = arith.constant 0 : index
    %c0_8 = arith.constant 0 : index
    %8 = vector.load %arg7[%c0_7, %c0_8] : memref<2x4xf32, #tpu.memory_space<vmem>>, vector<2x4xf32>
    %cst_9 = arith.constant dense<0xFF800000> : vector<2x4xf32>
    %9 = vector.multi_reduction <maximumf>, %3, %cst_9 [2] : vector<2x4x128xf32> to vector<2x4xf32>
    %10 = arith.maximumf %8, %9 : vector<2x4xf32>
    %c0_10 = arith.constant 0 : index
    %c0_11 = arith.constant 0 : index
    %11 = vector.load %arg7[%c0_10, %c0_11] : memref<2x4xf32, #tpu.memory_space<vmem>>, vector<2x4xf32>
    tpu.vector_store %arg7[%c0_10, %c0_11], %10 {strides = array<i32>} : memref<2x4xf32, #tpu.memory_space<vmem>>, vector<2x4xf32>,
    %c1_i32 = arith.constant 1 : i32
    %12 = arith.cmpi eq, %arg1, %c1_i32 : i32
    %13 = arith.extui %12 : i1 to i32
    %c0_i32_12 = arith.constant 0 : i32
    %14 = arith.cmpi ne, %13, %c0_i32_12 : i32
    scf.if %14 {
      %c0_13 = arith.constant 0 : index
      %c0_14 = arith.constant 0 : index
      %15 = vector.load %arg6[%c0_13, %c0_14] : memref<2x4xf32, #tpu.memory_space<vmem>>, vector<2x4xf32>
      %cst_15 = arith.constant 3.906250e-03 : f32
      %16 = vector.broadcast %cst_15 : f32 to vector<2x4xf32>
      %17 = arith.mulf %15, %16 : vector<2x4xf32>
      %c0_16 = arith.constant 0 : index
      %c0_17 = arith.constant 0 : index
      %18 = vector.load %arg7[%c0_16, %c0_17] : memref<2x4xf32, #tpu.memory_space<vmem>>, vector<2x4xf32>
      %19 = tpu.concatenate %17, %18 in 0 : vector<2x4xf32>, vector<2x4xf32> -> vector<4x4xf32>
      %c0_18 = arith.constant 0 : index
      %c0_19 = arith.constant 0 : index
      %20 = vector.load %arg3[%c0_18, %c0_19] : memref<2x4xf32, #tpu.memory_space<vmem>>, vector<2x4xf32>
      %c0_20 = arith.constant 0 : index
      %c0_21 = arith.constant 0 : index
      %21 = vector.load %arg4[%c0_20, %c0_21] : memref<4x2xf32, #tpu.memory_space<vmem>>, vector<4x2xf32>
      %22 = tpu.transpose %20, [1, 0] : vector<2x4xf32> -> vector<4x2xf32>
      %cst_22 = arith.constant dense<0.000000e+00> : vector<4x2xf32>
      %23 = tpu.matmul %19, %22, %cst_22 {dimension_numbers = #tpu.dot_dimension_numbers<[1], [0], [0], [1], [0, 0, 1, 1], [], []>} : vector<4x4xf32>, vector<4x2xf32>, vector<4x2xf32> -> vector<4x2xf32>
      %cst_23 = arith.constant 0.000000e+00 : f32
      %24 = vector.broadcast %cst_23 : f32 to vector<4x2xf32>
      %25 = arith.maximumf %23, %24 : vector<4x2xf32>
      %26 = tpu.transpose %21, [1, 0] : vector<4x2xf32> -> vector<2x4xf32>
      %cst_24 = arith.constant dense<0.000000e+00> : vector<4x4xf32>
      %27 = tpu.matmul %25, %26, %cst_24 {dimension_numbers = #tpu.dot_dimension_numbers<[1], [0], [0], [1], [0, 0, 1, 1], [], []>} : vector<4x2xf32>, vector<2x4xf32>, vector<4x4xf32> -> vector<4x4xf32>
      %28 = vector.extract_strided_slice %27 {offsets = [0, 0], sizes = [2, 4], strides = [1, 1]} : vector<4x4xf32> to vector<2x4xf32>
      %29 = vector.extract_strided_slice %27 {offsets = [2, 0], sizes = [2, 4], strides = [1, 1]} : vector<4x4xf32> to vector<2x4xf32>
      %30 = arith.addf %28, %29 : vector<2x4xf32>
      %31 = arith.negf %30 : vector<2x4xf32>
      %32 = math.exp %31 : vector<2x4xf32>
      %cst_25 = arith.constant 1.000000e+00 : f32
      %33 = vector.broadcast %cst_25 : f32 to vector<2x4xf32>
      %34 = arith.addf %33, %32 : vector<2x4xf32>
      %35 = arith.divf %33, %34 : vector<2x4xf32>
      %c0_26 = arith.constant 0 : index
      %c0_27 = arith.constant 0 : index
      %36 = vector.load %arg5[%c0_26, %c0_27] : memref<2x4xf32, #tpu.memory_space<vmem>>, vector<2x4xf32>
      tpu.vector_store %arg5[%c0_26, %c0_27], %35 {strides = array<i32>} : memref<2x4xf32, #tpu.memory_space<vmem>>, vector<2x4xf32>,
    } else {
    }
    return
  }
  func.func @transform_0(%arg0: i32, %arg1: i32) -> (i32, i32, i32) {
    %c0_i32 = arith.constant 0 : i32
    %c0_i32_0 = arith.constant 0 : i32
    return %arg0, %c0_i32, %arg1 : i32, i32, i32
  }
  func.func @transform_1(%arg0: i32, %arg1: i32) -> (i32, i32) {
    %c0_i32 = arith.constant 0 : i32
    %c0_i32_0 = arith.constant 0 : i32
    %c0_i32_1 = arith.constant 0 : i32
    return %c0_i32, %c0_i32_0 : i32, i32
  }
  func.func @transform_2(%arg0: i32, %arg1: i32) -> (i32, i32) {
    %c0_i32 = arith.constant 0 : i32
    %c0_i32_0 = arith.constant 0 : i32
    %c0_i32_1 = arith.constant 0 : i32
    return %c0_i32, %c0_i32_0 : i32, i32
  }
  func.func @transform_3(%arg0: i32, %arg1: i32) -> (i32, i32) {
    %c0_i32 = arith.constant 0 : i32
    %c0_i32_0 = arith.constant 0 : i32
    return %arg0, %c0_i32 : i32, i32
  }
}

</mosaic_0001>

<llo_original>
// kernel: tpu_custom_call.1
$region0: #{tpu_custom_call.1}
  #allocation0 [shape = 'u32[]', space=smem, size = 0x4, offset = 0x4, fixed_abs, tag = 'smem constant byte address 0x4 - core index']
  #allocation1 [shape = 'u32[144,128]{1,0:T(1,128)}', space=vmem, size = 0x12000, scoped, tag = 'internal scratch']
  #allocation2 [shape = 'f32[2,4]{1,0:T(2,128)}', space=vmem, size = 0x400, scoped, tag = 'scratch operand']
  #allocation3 [shape = 'f32[2,4]{1,0:T(2,128)}', space=vmem, size = 0x400, scoped, tag = 'scratch operand']
  %s0 = inlined_call_operand.hbm [shape: f32[2,4,256], index: 0, kind: input, shape index: {}]
  %s1 = inlined_call_operand.vmem [shape: f32[2,4], index: 1, kind: input, shape index: {}]
  %s2 = inlined_call_operand.vmem [shape: f32[4,2], index: 2, kind: input, shape index: {}]
  %s3 = inlined_call_operand.hbm [shape: f32[2,4], index: 3, kind: output, shape index: {}]
  %s4 = sld [smem:[#allocation0]]
  $region57: #{tpu_custom_call.1} parent=0
    _
  %s6 = ssub.s32 1, %s4
  %s7 = scalar_select 0, %s6, %s4
  $region1: #{tpu_custom_call.1} parent=0
    #allocation4 [shape = 'u8[8192]{0}', space=vmem, size = 0x2000, scoped, tag = 'input window, operand 0']
    #allocation5 [shape = 's32[2]{0}', space=sflag, size = 0x8, scoped, tag = 'scoped memory for tpu_custom_call.1']
    #allocation6 [shape = 's32[2]{0}', space=sflag, size = 0x8, scoped, tag = 'scoped memory for tpu_custom_call.1']
    #allocation7 [shape = 'u8[1024]{0}', space=vmem, size = 0x400, scoped, tag = 'output window, operand 0, single buffered']
    %8 = vsyncpa [#allocation5], 0
    %s9 = scalar_lea.sflag [#allocation5], 1
    %10 = vsyncpa %s9, 0
    %11 = vsyncpa [#allocation6], 0
    loop: start=0, step=1, limit=4
    $region2: #{tpu_custom_call.1} parent=1 // loop_pre_header
      _
    $region3: #{tpu_custom_call.1} parent=1 // loop_header
      %s13 = sphi 0, %s17
      %p14 = scmp.ge.s32.totalorder %s13, 4
      %s20 = sphi 0, %s32
      %s21 = sphi 0, %s28
      %s22 = sphi 0, %s20
      %s23 = sphi 0, %s21
      %s24 = sphi 0, %s22
      %s25 = sphi 0, %s23
      %s37 = sphi 0, %s39
      %s40 = sphi 0, %s37
      %s41 = sphi 0, %s40
      %s57 = sphi 0, %s41
      %s61 = sphi 0, %s61
      %s63 = sphi 0, %s61
      %s64 = sphi 0, %s63
      %s78 = sphi 0, %s64
      %s82 = sphi 0, %s82
      %s84 = sphi 0, %s82
      %s85 = sphi 0, %s84
      %s99 = sphi 0, %s85
      %s105 = sphi 0, %s107
      %s108 = sphi 0, %s105
      %s109 = sphi 0, %s108
      %s125 = sphi 0, %s109
    $region4: #{tpu_custom_call.1} parent=1 // loop_header_branch
      %16 = sbr.rel (%p14) target = $region8
    $region5: #{tpu_custom_call.1} parent=1 // loop_body
      %s18 = ssub.s32 %s13, 1
      %s19 = ssub.s32 %s13, 2
      %s26 = sadd.s32 1, %s21
      %p27 = scmp.ge.s32.totalorder %s26, 2
      %s28 = scalar_select %p27, 0, %s26
      %s29 = sadd.s32 1, %s20
      %s30 = scalar_select %p27, %s29, %s20
      %p31 = scmp.ge.s32.totalorder %s30, 1
      %s32 = scalar_select %p31, 0, %s30
      %s33 = ssub.s32 %s20, %s32
      %s34 = ssub.s32 %s21, %s28
      %s35 = sor.u32 %s33, %s34
      %p36 = scmp.eq.s32.totalorder %s35, 0
      %s38 = sadd.s32 %s37, 1
      %s39 = scalar_select %p36, %s37, %s38
      %p42 = pneg %p36
      %p43 = scmp.eq.s32.totalorder %s13, 1
      %p44 = por %p42, %p43
      %p45 = scmp.ne.s32.totalorder %s37, %s40
      %p46 = scmp.eq.s32.totalorder %s13, 0
      %p47 = por %p45, %p46
      %p48 = scmp.ne.s32.totalorder %s37, %s40
      %p49 = scmp.eq.s32.totalorder %s18, 1
      %p50 = por %p48, %p49
      %p51 = scmp.ne.s32.totalorder %s40, %s41
      %p52 = scmp.eq.s32.totalorder %s18, 0
      %p53 = por %p51, %p52
      %p54 = scmp.ne.s32.totalorder %s40, %s41
      %p55 = scmp.eq.s32.totalorder %s19, 1
      %p56 = por %p54, %p55
      %p58 = scmp.ne.s32.totalorder %s41, %s57
      %p59 = scmp.eq.s32.totalorder %s19, 0
      %p60 = por %p58, %p59
      %s62 = sadd.s32 %s61, 1
      %p65 = scmp.eq.s32.totalorder %s13, 1
      %p66 = scmp.ne.s32.totalorder %s61, %s63
      %p67 = scmp.eq.s32.totalorder %s13, 0
      %p68 = por %p66, %p67
      %p69 = scmp.ne.s32.totalorder %s61, %s63
      %p70 = scmp.eq.s32.totalorder %s18, 1
      %p71 = por %p69, %p70
      %p72 = scmp.ne.s32.totalorder %s63, %s64
      %p73 = scmp.eq.s32.totalorder %s18, 0
      %p74 = por %p72, %p73
      %p75 = scmp.ne.s32.totalorder %s63, %s64
      %p76 = scmp.eq.s32.totalorder %s19, 1
      %p77 = por %p75, %p76
      %p79 = scmp.ne.s32.totalorder %s64, %s78
      %p80 = scmp.eq.s32.totalorder %s19, 0
      %p81 = por %p79, %p80
      %s83 = sadd.s32 %s82, 1
      %p86 = scmp.eq.s32.totalorder %s13, 1
      %p87 = scmp.ne.s32.totalorder %s82, %s84
      %p88 = scmp.eq.s32.totalorder %s13, 0
      %p89 = por %p87, %p88
      %p90 = scmp.ne.s32.totalorder %s82, %s84
      %p91 = scmp.eq.s32.totalorder %s18, 1
      %p92 = por %p90, %p91
      %p93 = scmp.ne.s32.totalorder %s84, %s85
      %p94 = scmp.eq.s32.totalorder %s18, 0
      %p95 = por %p93, %p94
      %p96 = scmp.ne.s32.totalorder %s84, %s85
      %p97 = scmp.eq.s32.totalorder %s19, 1
      %p98 = por %p96, %p97
      %p100 = scmp.ne.s32.totalorder %s85, %s99
      %p101 = scmp.eq.s32.totalorder %s19, 0
      %p102 = por %p100, %p101
      %s103 = ssub.s32 %s20, %s32
      %p104 = scmp.eq.s32.totalorder %s103, 0
      %s106 = sadd.s32 %s105, 1
      %s107 = scalar_select %p104, %s105, %s106
      %p110 = pneg %p104
      %p111 = scmp.eq.s32.totalorder %s13, 1
      %p112 = por %p110, %p111
      %p113 = scmp.ne.s32.totalorder %s105, %s108
      %p114 = scmp.eq.s32.totalorder %s13, 0
      %p115 = por %p113, %p114
      %p116 = scmp.ne.s32.totalorder %s105, %s108
      %p117 = scmp.eq.s32.totalorder %s18, 1
      %p118 = por %p116, %p117
      %p119 = scmp.ne.s32.totalorder %s108, %s109
      %p120 = scmp.eq.s32.totalorder %s18, 0
      %p121 = por %p119, %p120
      %p122 = scmp.ne.s32.totalorder %s108, %s109
      %p123 = scmp.eq.s32.totalorder %s19, 1
      %p124 = por %p122, %p123
      %p126 = scmp.ne.s32.totalorder %s109, %s125
      %p127 = scmp.eq.s32.totalorder %s19, 0
      %p128 = por %p126, %p127
      %p129 = scmp.le.s32.totalorder 1, %s13
      %p130 = scmp.lt.s32.totalorder %s13, 3
      %p131 = pnand %p129, %p130
      %p132 = pneg %p131
      // Predicated region
      $region9: #{tpu_custom_call.1} parent=5 // pred_check
        _
      $region10: #{tpu_custom_call.1} parent=5 // pred_check_branch
        %134 = sbr.rel (%p131) target = $region12
      $region11: #{tpu_custom_call.1} parent=5 // pred_region
        %s135 = ssub.s32 %s13, 1
        // Predicated region
        $region13: #{tpu_custom_call.1} parent=11 // pred_check
          %p136 = pneg %p74
        $region14: #{tpu_custom_call.1} parent=11 // pred_check_branch
          %138 = sbr.rel (%p136) target = $region16
        $region15: #{tpu_custom_call.1} parent=11 // pred_region
          _
        $region16: #{tpu_custom_call.1} parent=11 // pred_fallthru
          _
        // Predicated region
        $region17: #{tpu_custom_call.1} parent=11 // pred_check
          %p139 = pneg %p95
        $region18: #{tpu_custom_call.1} parent=11 // pred_check_branch
          %141 = sbr.rel (%p139) target = $region20
        $region19: #{tpu_custom_call.1} parent=11 // pred_region
          _
        $region20: #{tpu_custom_call.1} parent=11 // pred_fallthru
          _
      $region12: #{tpu_custom_call.1} parent=5 // pred_fallthru
        _
      %p142 = scmp.lt.s32.totalorder %s13, 2
      // Predicated region
      $region21: #{tpu_custom_call.1} parent=5 // pred_check
        %p143 = pneg %p142
      $region22: #{tpu_custom_call.1} parent=5 // pred_check_branch
        %145 = sbr.rel (%p143) target = $region24
      $region23: #{tpu_custom_call.1} parent=5 // pred_region
        // Predicated region
        $region25: #{tpu_custom_call.1} parent=23 // pred_check
          %p146 = pneg %p47
        $region26: #{tpu_custom_call.1} parent=23 // pred_check_branch
          %148 = sbr.rel (%p146) target = $region28
        $region27: #{tpu_custom_call.1} parent=23 // pred_region
          %s149 = sand.u32 %s37, 1
          %s150 = scalar_lea.sflag [#allocation5], %s149
          %s151 = sand.u32 %s37, 1
          %s152 = smul.addr %s151, 8
          %s153 = scalar_lea.vmem [#allocation4], %s152
          %s154 = smul.u32 2, %s20
          %s156 = ssub.s32 128, 128
          %157 = vsyncadd %s150, %s156
          %s158 = smul.addr %s154, 2
          %s159 = sadd.s32 %s21, %s158
          %s160 = smul.addr %s159, 64
          %s161 = scalar_lea.hbm %s0, %s160
          %s162 = sshll.u32 %s153, 4
          %s163 = int_to_ptr.vmem [resolvable:$true] %s162
          %168 = dma.hbm_to_vmem [thread:$0]  %s161, 128, %s163, %s150, 128, 64, 4
        $region28: #{tpu_custom_call.1} parent=23 // pred_fallthru
          _
      $region24: #{tpu_custom_call.1} parent=5 // pred_fallthru
        _
      %p169 = scmp.le.s32.totalorder 1, %s13
      %p170 = scmp.lt.s32.totalorder %s13, 3
      %p171 = pnand %p169, %p170
      %p172 = pneg %p171
      // Predicated region
      $region29: #{tpu_custom_call.1} parent=5 // pred_check
        _
      $region30: #{tpu_custom_call.1} parent=5 // pred_check_branch
        %174 = sbr.rel (%p171) target = $region32
      $region31: #{tpu_custom_call.1} parent=5 // pred_region
        %s175 = ssub.s32 %s13, 1
        %s176 = sand.u32 %s40, 1
        %s177 = scalar_lea.sflag [#allocation5], %s176
        %s178 = sand.u32 %s40, 1
        %s179 = smul.addr %s178, 8
        %s180 = scalar_lea.vmem [#allocation4], %s179
        // Predicated region
        $region33: #{tpu_custom_call.1} parent=31 // pred_check
          %p181 = pneg %p53
        $region34: #{tpu_custom_call.1} parent=31 // pred_check_branch
          %183 = sbr.rel (%p181) target = $region36
        $region35: #{tpu_custom_call.1} parent=31 // pred_region
          %184 = dma.done %s177, 128
        $region36: #{tpu_custom_call.1} parent=31 // pred_fallthru
          _
        %s185 = sand.u32 %s40, 1
        %s186 = scalar_lea.sflag [#allocation5], %s185
        %s187 = sand.u32 %s40, 1
        %s188 = smul.addr %s187, 8
        %s189 = scalar_lea.vmem [#allocation4], %s188
        %p190 = pneg %p53
        %p191 = pneg %p50
        %p192 = pneg %p74
        %p193 = pneg %p71
        %p194 = pneg %p95
        %p195 = pneg %p92
        %p196 = pneg %p121
        %p197 = pneg %p118
        %s198 = smul.u32 2, %s22
        %p199 = scmp.eq.s32.totalorder %s23, 0
        // Predicated region
        $region37: #{tpu_custom_call.1} parent=31 // pred_check
          %p200 = pneg %p199
        $region38: #{tpu_custom_call.1} parent=31 // pred_check_branch
          %202 = sbr.rel (%p200) target = $region40
        $region39: #{tpu_custom_call.1} parent=31 // pred_region
          %vm203 = vcmask 25600
          %204 = vst.msk [vmem:[#allocation2] sm:$0x3] %vm203, 0.0
          %205 = vst.msk [vmem:[#allocation3] sm:$0x3] %vm203, -inf
        $region40: #{tpu_custom_call.1} parent=31 // pred_fallthru
          _
        %v206 = vld [vmem:[%s180] sm:$0xf]
        %v207 = vld [vmem:[%s180 + $0x4] sm:$0xf]
        %v208 = vld [vmem:[#allocation2] sm:$0x3]
        %vm209 = vcmask 1043456
        %v210 = vsel %vm209, %v206, 0.0
        %211 = vadd.xlane.f32.xlu0 %v210
        %v212 = vpop.xlane.xlu0 %211
        %v213 = vsel %vm209, %v207, 0.0
        %214 = vadd.xlane.f32.xlu0 %v213
        %v215 = vpop.xlane.xlu0 %214
        %v218 = vlaneseq
        %v219 = vand.u32 %v218, 127
        %v220 = vlaneseq
        %v221 = vshrl.u32 %v220, 7
        %v222 = vsub.s32 %v219, %v221
        %v223 = vrot.slane %v212, %v222
        %v224 = vlaneseq
        %v225 = vshrl.u32 %v224, 7
        %v226 = vsub.s32 %v219, %v225
        %v227 = vrot.slane %v215, %v226
        %vm228 = vcmask 1041409
        %v229 = vsel %vm228, %v227, %v223
        %v231 = vadd.f32 %v208, %v229
        %vm232 = vcmask 25600
        %233 = vst.msk [vmem:[#allocation2] sm:$0x3] %vm232, %v231
        %v234 = vld [vmem:[#allocation3] sm:$0x3]
        %v235 = vsel %vm209, %v206, -inf
        %236 = vmax.xlane.f32.xlu0 %v235
        %v237 = vpop.xlane.xlu0 %236
        %v238 = vsel %vm209, %v207, -inf
        %239 = vmax.xlane.f32.xlu0 %v238
        %v240 = vpop.xlane.xlu0 %239
        %v243 = vlaneseq
        %v244 = vshrl.u32 %v243, 7
        %v245 = vsub.s32 %v219, %v244
        %v246 = vrot.slane %v237, %v245
        %v247 = vlaneseq
        %v248 = vshrl.u32 %v247, 7
        %v249 = vsub.s32 %v219, %v248
        %v250 = vrot.slane %v240, %v249
        %v251 = vsel %vm228, %v250, %v246
        %v253 = vmax.f32 %v234, %v251
        %254 = vst.msk [vmem:[#allocation3] sm:$0x3] %vm232, %v253
        %p255 = scmp.eq.s32.totalorder %s23, 1
        // Predicated region
        $region41: #{tpu_custom_call.1} parent=31 // pred_check
          %p256 = pneg %p255
        $region42: #{tpu_custom_call.1} parent=31 // pred_check_branch
          %258 = sbr.rel (%p256) target = $region44
        $region43: #{tpu_custom_call.1} parent=31 // pred_region
          %v259 = vld [vmem:[#allocation2] sm:$0x3]
          %v260 = vmul.f32 %v259, 0.00390625
          %v261 = vld [vmem:[#allocation3] sm:$0x3]
          %v263 = vrot.slane %v261, 6
          %vm265 = vcmask 1041408
          %v266 = vsel %vm265, %v260, %v263
          %v267 = vld [vmem:[%s1] sm:$0x3]
          %v268 = vld [vmem:[%s2] sm:$0xf]
          %vm269 = vcmask 31744
          %v271 = vsel %vm269, %v266, 0
          %v274 = vsel %vm269, %v267, 0
          %276 = vmatprep.subr.mxu0 0.0
          %277 = vmatpush1.xpose.msra.mxu0 %v274
          %278 = vmatprep.subr.mxu0 0.0
          %279 = vmatpush1.xpose.msra.mxu0 0.0
          %280 = vmatprep.subr.mxu0 0.0
          %281 = vmatpush1.xpose.msra.mxu0 0.0
          %282 = vmatprep.subr.mxu0 0.0
          %283 = vmatpush1.xpose.msra.mxu0 0.0
          %284 = vmatprep.subr.mxu0 0.0
          %285 = vmatpush1.xpose.msra.mxu0 0.0
          %286 = vmatprep.subr.mxu0 0.0
          %287 = vmatpush1.xpose.msra.mxu0 0.0
          %288 = vmatprep.subr.mxu0 0.0
          %289 = vmatpush1.xpose.msra.mxu0 0.0
          %290 = vmatprep.subr.mxu0 0.0
          %291 = vmatpush1.xpose.msra.mxu0 0.0
          %292 = vmatprep.subr.mxu0 0.0
          %293 = vmatpush1.xpose.msra.mxu0 0.0
          %294 = vmatprep.subr.mxu0 0.0
          %295 = vmatpush1.xpose.msra.mxu0 0.0
          %296 = vmatprep.subr.mxu0 0.0
          %297 = vmatpush1.xpose.msra.mxu0 0.0
          %298 = vmatprep.subr.mxu0 0.0
          %299 = vmatpush1.xpose.msra.mxu0 0.0
          %300 = vmatprep.subr.mxu0 0.0
          %301 = vmatpush1.xpose.msra.mxu0 0.0
          %302 = vmatprep.subr.mxu0 0.0
          %303 = vmatpush1.xpose.msra.mxu0 0.0
          %304 = vmatprep.subr.mxu0 0.0
          %305 = vmatpush1.xpose.msra.mxu0 0.0
          %306 = vmatprep.subr.mxu0 0.0
          %307 = vmatpush1.xpose.msra.mxu0 0.0
          %308 = vmatprep.subr.mxu0 0.0
          %309 = vmatpush1.xpose.msra.mxu0 0.0
          %310 = vmatprep.subr.mxu0 0.0
          %311 = vmatpush1.xpose.msra.mxu0 0.0
          %312 = vmatprep.subr.mxu0 0.0
          %313 = vmatpush1.xpose.msra.mxu0 0.0
          %314 = vmatprep.subr.mxu0 0.0
          %315 = vmatpush1.xpose.msra.mxu0 0.0
          %316 = vmatprep.subr.mxu0 0.0
          %317 = vmatpush1.xpose.msra.mxu0 0.0
          %318 = vmatprep.subr.mxu0 0.0
          %319 = vmatpush1.xpose.msra.mxu0 0.0
          %320 = vmatprep.subr.mxu0 0.0
          %321 = vmatpush1.xpose.msra.mxu0 0.0
          %322 = vmatprep.subr.mxu0 0.0
          %323 = vmatpush1.xpose.msra.mxu0 0.0
          %324 = vmatprep.subr.mxu0 0.0
          %325 = vmatpush1.xpose.msra.mxu0 0.0
          %326 = vmatprep.subr.mxu0 0.0
          %327 = vmatpush1.xpose.msra.mxu0 0.0
          %328 = vmatprep.subr.mxu0 0.0
          %329 = vmatpush1.xpose.msra.mxu0 0.0
          %330 = vmatprep.subr.mxu0 0.0
          %331 = vmatpush1.xpose.msra.mxu0 0.0
          %332 = vmatprep.subr.mxu0 0.0
          %333 = vmatpush1.xpose.msra.mxu0 0.0
          %334 = vmatprep.subr.mxu0 0.0
          %335 = vmatpush1.xpose.msra.mxu0 0.0
          %336 = vmatprep.subr.mxu0 0.0
          %337 = vmatpush1.xpose.msra.mxu0 0.0
          %338 = vmatprep.subr.mxu0 0.0
          %339 = vmatpush1.xpose.msra.mxu0 0.0
          %340 = vmatprep.mubr.f32.mxu0 0.0
          %341 = vmatmul.mubr.f32.gmra.mrb[0].mxu0 %v271
          %v342 = vpop.f32.mrb[0].mxu0
          %v343 = vadd.f32 0.0, %v342
          %v344 = vpop.f32.mrb[0].mxu0
          %345 = vdwg.mxu0
          %v346 = vmax.f32 %v343, 0.0
          %vm347 = vcmask 15360
          %v349 = vsel %vm347, %v346, 0
          %v352 = vsel %vm347, %v268, 0
          %354 = vmatprep.subr.mxu0 0.0
          %355 = vmatpush1.xpose.msra.mxu0 %v352
          %356 = vmatprep.subr.mxu0 0.0
          %357 = vmatpush1.xpose.msra.mxu0 0.0
          %358 = vmatprep.subr.mxu0 0.0
          %359 = vmatpush1.xpose.msra.mxu0 0.0
          %360 = vmatprep.subr.mxu0 0.0
          %361 = vmatpush1.xpose.msra.mxu0 0.0
          %362 = vmatprep.subr.mxu0 0.0
          %363 = vmatpush1.xpose.msra.mxu0 0.0
          %364 = vmatprep.subr.mxu0 0.0
          %365 = vmatpush1.xpose.msra.mxu0 0.0
          %366 = vmatprep.subr.mxu0 0.0
          %367 = vmatpush1.xpose.msra.mxu0 0.0
          %368 = vmatprep.subr.mxu0 0.0
          %369 = vmatpush1.xpose.msra.mxu0 0.0
          %370 = vmatprep.subr.mxu0 0.0
          %371 = vmatpush1.xpose.msra.mxu0 0.0
          %372 = vmatprep.subr.mxu0 0.0
          %373 = vmatpush1.xpose.msra.mxu0 0.0
          %374 = vmatprep.subr.mxu0 0.0
          %375 = vmatpush1.xpose.msra.mxu0 0.0
          %376 = vmatprep.subr.mxu0 0.0
          %377 = vmatpush1.xpose.msra.mxu0 0.0
          %378 = vmatprep.subr.mxu0 0.0
          %379 = vmatpush1.xpose.msra.mxu0 0.0
          %380 = vmatprep.subr.mxu0 0.0
          %381 = vmatpush1.xpose.msra.mxu0 0.0
          %382 = vmatprep.subr.mxu0 0.0
          %383 = vmatpush1.xpose.msra.mxu0 0.0
          %384 = vmatprep.subr.mxu0 0.0
          %385 = vmatpush1.xpose.msra.mxu0 0.0
          %386 = vmatprep.subr.mxu0 0.0
          %387 = vmatpush1.xpose.msra.mxu0 0.0
          %388 = vmatprep.subr.mxu0 0.0
          %389 = vmatpush1.xpose.msra.mxu0 0.0
          %390 = vmatprep.subr.mxu0 0.0
          %391 = vmatpush1.xpose.msra.mxu0 0.0
          %392 = vmatprep.subr.mxu0 0.0
          %393 = vmatpush1.xpose.msra.mxu0 0.0
          %394 = vmatprep.subr.mxu0 0.0
          %395 = vmatpush1.xpose.msra.mxu0 0.0
          %396 = vmatprep.subr.mxu0 0.0
          %397 = vmatpush1.xpose.msra.mxu0 0.0
          %398 = vmatprep.subr.mxu0 0.0
          %399 = vmatpush1.xpose.msra.mxu0 0.0
          %400 = vmatprep.subr.mxu0 0.0
          %401 = vmatpush1.xpose.msra.mxu0 0.0
          %402 = vmatprep.subr.mxu0 0.0
          %403 = vmatpush1.xpose.msra.mxu0 0.0
          %404 = vmatprep.subr.mxu0 0.0
          %405 = vmatpush1.xpose.msra.mxu0 0.0
          %406 = vmatprep.subr.mxu0 0.0
          %407 = vmatpush1.xpose.msra.mxu0 0.0
          %408 = vmatprep.subr.mxu0 0.0
          %409 = vmatpush1.xpose.msra.mxu0 0.0
          %410 = vmatprep.subr.mxu0 0.0
          %411 = vmatpush1.xpose.msra.mxu0 0.0
          %412 = vmatprep.subr.mxu0 0.0
          %413 = vmatpush1.xpose.msra.mxu0 0.0
          %414 = vmatprep.subr.mxu0 0.0
          %415 = vmatpush1.xpose.msra.mxu0 0.0
          %416 = vmatprep.subr.mxu0 0.0
          %417 = vmatpush1.xpose.msra.mxu0 0.0
          %418 = vmatprep.mubr.f32.mxu0 0.0
          %419 = vmatmul.mubr.f32.gmra.mrb[0].mxu0 %v349
          %v420 = vpop.f32.mrb[0].mxu0
          %v421 = vadd.f32 0.0, %v420
          %v422 = vpop.f32.mrb[0].mxu0
          %423 = vdwg.mxu0
          %v425 = vrot.slane %v421, 2
          %v427 = vadd.f32 %v421, %v425
          %v428 = vxor.u32 %v427, 2147483648
          %v429 = vmul.f32 %v428, 1.442695
          %v430 = vpow.pop %v429
          %v431 = vadd.f32 %v430, 1.0
          %v432 = vrcp.pop %v431
          %v433 = vmul.f32 1.0, %v432
          %434 = vst.msk [vmem:[#allocation7] sm:$0x3] %vm232, %v433
        $region44: #{tpu_custom_call.1} parent=31 // pred_fallthru
          _
        // Predicated region
        $region45: #{tpu_custom_call.1} parent=31 // pred_check
          %p435 = pneg %p118
        $region46: #{tpu_custom_call.1} parent=31 // pred_check_branch
          %437 = sbr.rel (%p435) target = $region48
        $region47: #{tpu_custom_call.1} parent=31 // pred_region
          %s439 = ssub.s32 32, 32
          %440 = vsyncadd [#allocation6], %s439
          %s441 = smul.addr %s22, 32
          %s442 = scalar_lea.hbm %s3, %s441
          %s444 = sshll.u32 [#allocation7], 4
          %s445 = int_to_ptr.vmem [resolvable:$true] %s444
          %447 = dma.vmem_to_hbm [thread:$0]  %s445, 32, %s442, [#allocation6]
        $region48: #{tpu_custom_call.1} parent=31 // pred_fallthru
          _
        // Predicated region
        $region49: #{tpu_custom_call.1} parent=31 // pred_check
          %p448 = pneg %p118
        $region50: #{tpu_custom_call.1} parent=31 // pred_check_branch
          %450 = sbr.rel (%p448) target = $region52
        $region51: #{tpu_custom_call.1} parent=31 // pred_region
          %451 = dma.done [#allocation6], 32
        $region52: #{tpu_custom_call.1} parent=31 // pred_fallthru
          _
      $region32: #{tpu_custom_call.1} parent=5 // pred_fallthru
        _
      %p452 = scmp.le.s32.totalorder 2, %s13
      // Predicated region
      $region53: #{tpu_custom_call.1} parent=5 // pred_check
        %p453 = pneg %p452
      $region54: #{tpu_custom_call.1} parent=5 // pred_check_branch
        %455 = sbr.rel (%p453) target = $region56
      $region55: #{tpu_custom_call.1} parent=5 // pred_region
        %s456 = ssub.s32 %s13, 2
      $region56: #{tpu_custom_call.1} parent=5 // pred_fallthru
        _
    $region6: #{tpu_custom_call.1} parent=1 // loop_footer
      %s17 = sadd.s32 1, %s13
    $region7: #{tpu_custom_call.1} parent=1 // loop_footer_branch
      %12 = sbr.rel target = $region3
    $region8: #{tpu_custom_call.1} parent=1 // loop_exit
      _
    %457 = vsyncpa [#allocation5], 1
    %s458 = scalar_lea.sflag [#allocation5], 1
    %459 = vsyncpa %s458, 1
    %460 = vsyncpa [#allocation6], 1
    %s461 = scalar_lea.sflag [#allocation6], 1
    %462 = vsyncpa %s461, 1

</llo_original>
